<compile_context>
chip_gen: v5e
topology: v5e:2x2
jax: 0.10.0
libtpu: 0.0.40
codegen_flags: <defaults>
</compile_context>

<pallas_src>
import functools

import jax
import jax.numpy as jnp
from jax import lax
from jax.experimental import pallas as pl
from jax.experimental.pallas import tpu as pltpu


# Contract z's feature axis (1) with W's in_features axis (1): y = z @ W^T
_DNUMS = (((1,), (1,)), ((), ()))


def _koopman_single_block_kernel(z_ref, w_ref, o_ref):
    """Whole problem in VMEM: one MXU dot, no grid, no scratch."""
    o_ref[...] = lax.dot_general(
        z_ref[...],
        w_ref[...],
        dimension_numbers=_DNUMS,
        preferred_element_type=jnp.float32,
    ).astype(o_ref.dtype)


def _koopman_tiled_kernel(z_ref, w_ref, o_ref):
    """One (tm, tn) output tile; accumulate over the K grid axis directly into
    the resident f32 output block (no separate accumulator scratch)."""

    @pl.when(pl.program_id(2) == 0)
    def _():
        o_ref[...] = jnp.zeros_like(o_ref)

    o_ref[...] += lax.dot_general(
        z_ref[...],
        w_ref[...],
        dimension_numbers=_DNUMS,
        preferred_element_type=jnp.float32,
    ).astype(o_ref.dtype)


# Problems whose operands (z, W, y) total at most this many bytes take the
# single-block path. Stays well under the default scoped-VMEM limit on every
# TPU generation (v5e/v6e: 128 MiB physical, v7x: 64 MiB physical).
_SINGLE_BLOCK_BYTE_LIMIT = 24 * 1024 * 1024


@functools.partial(
    jax.jit, static_argnames=("tm", "tn", "tk", "force_tiled")
)
def koopman_operator_forward(z, weight, *, tm=None, tn=128, tk=128,
                             force_tiled=False):
    """y = z @ weight.T  (nn.Linear(latent_dim, latent_dim, bias=False)).

    z:      (B, D) float32
    weight: (D, D) float32, PyTorch nn.Linear layout (out_features, in_features)
    """
    B, D = z.shape
    assert weight.shape == (D, D)

    itemsize = jnp.dtype(z.dtype).itemsize
    total_bytes = (2 * B * D + D * D) * itemsize

    if not force_tiled and total_bytes <= _SINGLE_BLOCK_BYTE_LIMIT:
        # Single-block path: full arrays live in VMEM, no grid, no scratch.
        return pl.pallas_call(
            _koopman_single_block_kernel,
            out_shape=jax.ShapeDtypeStruct((B, D), z.dtype),
        )(z, weight)

    # ---- Tiled path (only needed when latent_dim / batch grow) ----
    # Accumulation happens in the f32 output block, so keep f32 here.
    assert z.dtype == jnp.float32, "tiled path accumulates in the f32 output"
    if tm is None:
        tm = 128 if B % 128 == 0 else B
    assert B % tm == 0 and D % tn == 0 and D % tk == 0

    grid = (B // tm, D // tn, D // tk)

    return pl.pallas_call(
        _koopman_tiled_kernel,
        out_shape=jax.ShapeDtypeStruct((B, D), z.dtype),
        grid_spec=pltpu.PrefetchScalarGridSpec(
            num_scalar_prefetch=0,
            grid=grid,
            in_specs=[
                # z tile: (tm, tk) at block (i, k)
                pl.BlockSpec((tm, tk), lambda i, j, k: (i, k)),
                # weight tile in native (out_features, in_features) layout:
                # (tn, tk) at block (j, k) — contracted on axis 1 in-kernel.
                pl.BlockSpec((tn, tk), lambda i, j, k: (j, k)),
            ],
            out_specs=pl.BlockSpec((tm, tn), lambda i, j, k: (i, j)),
        ),
        compiler_params=pltpu.CompilerParams(
            dimension_semantics=("parallel", "parallel", "arbitrary")
        ),
    )(z, weight)


if __name__ == "__main__":
    key = jax.random.PRNGKey(0)
    kz, kw, kz2, kw2 = jax.random.split(key, 4)

    # --- Small default case (single-block fast path) ---
    latent_dim = 256
    batch = 8
    bound = 1.0 / (latent_dim ** 0.5)
    weight = jax.random.uniform(
        kw, (latent_dim, latent_dim), jnp.float32, minval=-bound, maxval=bound
    )
    z = jax.random.normal(kz, (batch, latent_dim), jnp.float32)

    y = jax.block_until_ready(koopman_operator_forward(z, weight))
    y_ref = z @ weight.T
    assert y.shape == (batch, latent_dim)
    assert jnp.allclose(y, y_ref, atol=1e-4, rtol=1e-4)

    # --- Larger case exercising the tiled path ---
    latent_dim2 = 512
    batch2 = 128
    bound2 = 1.0 / (latent_dim2 ** 0.5)
    weight2 = jax.random.uniform(
        kw2, (latent_dim2, latent_dim2), jnp.float32,
        minval=-bound2, maxval=bound2,
    )
    z2 = jax.random.normal(kz2, (batch2, latent_dim2), jnp.float32)

    y2 = jax.block_until_ready(
        koopman_operator_forward(
            z2, weight2, tm=128, tn=256, tk=256, force_tiled=True
        )
    )
    y2_ref = z2 @ weight2.T
    assert y2.shape == (batch2, latent_dim2)
    assert jnp.allclose(y2, y2_ref, atol=1e-4, rtol=1e-4)

    print("KERNEL_OK")
</pallas_src>

<mosaic_0001>
module attributes {stable_mosaic.version = 11 : i64} {
  func.func @_koopman_single_block_kernel(%arg0: memref<8x256xf32, #tpu.memory_space<vmem>>, %arg1: memref<256x256xf32, #tpu.memory_space<vmem>>, %arg2: memref<8x256xf32, #tpu.memory_space<vmem>>) attributes {dimension_semantics = [], scalar_prefetch = 0 : i64, scratch_operands = 0 : i64, tpu.core_type = #tpu.core_type<tc>} {
    %c0 = arith.constant 0 : index
    %c0_0 = arith.constant 0 : index
    %0 = vector.load %arg0[%c0, %c0_0] : memref<8x256xf32, #tpu.memory_space<vmem>>, vector<8x256xf32>
    %c0_1 = arith.constant 0 : index
    %c0_2 = arith.constant 0 : index
    %1 = vector.load %arg1[%c0_1, %c0_2] : memref<256x256xf32, #tpu.memory_space<vmem>>, vector<256x256xf32>
    %cst = arith.constant dense<0.000000e+00> : vector<8x256xf32>
    %2 = tpu.matmul %0, %1, %cst {dimension_numbers = #tpu.dot_dimension_numbers<[1], [1], [0], [0], [0, 0, 1, 0], [], []>} : vector<8x256xf32>, vector<256x256xf32>, vector<8x256xf32> -> vector<8x256xf32>
    %c0_3 = arith.constant 0 : index
    %c0_4 = arith.constant 0 : index
    %3 = vector.load %arg2[%c0_3, %c0_4] : memref<8x256xf32, #tpu.memory_space<vmem>>, vector<8x256xf32>
    tpu.vector_store %arg2[%c0_3, %c0_4], %2 {strides = array<i32>} : memref<8x256xf32, #tpu.memory_space<vmem>>, vector<8x256xf32>,
    return
  }
}

</mosaic_0001>

<llo_original>
// kernel: koopman_operator_forward.1
$region0: #{koopman_operator_forward.1}
  #allocation0 [shape = 'u32[]', space=smem, size = 0x4, offset = 0x4, fixed_abs, tag = 'smem constant byte address 0x4 - core index']
  #allocation1 [shape = 'u32[72,128]{1,0:T(1,128)}', space=vmem, size = 0x9000, scoped, tag = 'internal scratch']
  %s0 = inlined_call_operand.hbm [shape: f32[8,256], index: 0, kind: input, shape index: {}]
  %s1 = inlined_call_operand.hbm [shape: f32[256,256], index: 1, kind: input, shape index: {}]
  %s2 = inlined_call_operand.hbm [shape: f32[8,256], index: 2, kind: output, shape index: {}]
  %s3 = sld [smem:[#allocation0]]
  $region26: #{koopman_operator_forward.1} parent=0
    _
  %s5 = ssub.s32 1, %s3
  %s6 = scalar_select 0, %s5, %s3
  $region1: #{koopman_operator_forward.1} parent=0
    #allocation2 [shape = 'u8[8192]{0}', space=vmem, size = 0x2000, scoped, tag = 'input window, operand 0, single buffered']
    #allocation3 [shape = 's32[1]{0}', space=sflag, size = 0x4, scoped, tag = 'scoped memory for koopman_operator_forward.1']
    #allocation4 [shape = 's32[1]{0}', space=sflag, size = 0x4, scoped, tag = 'scoped memory for koopman_operator_forward.1']
    #allocation5 [shape = 'u8[262144]{0}', space=vmem, size = 0x40000, scoped, tag = 'input window, operand 1, single buffered']
    #allocation6 [shape = 's32[1]{0}', space=sflag, size = 0x4, scoped, tag = 'scoped memory for koopman_operator_forward.1']
    #allocation7 [shape = 'u8[8192]{0}', space=vmem, size = 0x2000, scoped, tag = 'output window, operand 0, single buffered']
    %7 = vsyncpa [#allocation3], 0
    %8 = vsyncpa [#allocation6], 0
    %9 = vsyncpa [#allocation4], 0
    // Predicated region
    $region2: #{koopman_operator_forward.1} parent=1 // pred_check
      _
    $region3: #{koopman_operator_forward.1} parent=1 // pred_check_branch
      %11 = sbr.rel (0) target = $region5
    $region4: #{koopman_operator_forward.1} parent=1 // pred_region
      %13 = vsyncadd [#allocation3], 0
      %s15 = sshll.u32 %s0, 4
      %s16 = int_to_ptr.hbm [resolvable:$true] %s15
      %s17 = sshll.u32 [#allocation2], 4
      %s18 = int_to_ptr.vmem [resolvable:$true] %s17
      %20 = dma.hbm_to_vmem [thread:$0]  %s16, 256, %s18, [#allocation3]
    $region5: #{koopman_operator_forward.1} parent=1 // pred_fallthru
      _
    // Predicated region
    $region6: #{koopman_operator_forward.1} parent=1 // pred_check
      _
    $region7: #{koopman_operator_forward.1} parent=1 // pred_check_branch
      %22 = sbr.rel (0) target = $region9
    $region8: #{koopman_operator_forward.1} parent=1 // pred_region
      %24 = vsyncadd [#allocation6], 0
      %s25 = sshll.u32 %s1, 4
      %s26 = int_to_ptr.hbm [resolvable:$true] %s25
      %s27 = sshll.u32 [#allocation5], 4
      %s28 = int_to_ptr.vmem [resolvable:$true] %s27
      %33 = dma.hbm_to_vmem [thread:$0]  %s26, 8192, %s28, [#allocation6], 256, 256, 16
    $region9: #{koopman_operator_forward.1} parent=1 // pred_fallthru
      _
    // Predicated region
    $region10: #{koopman_operator_forward.1} parent=1 // pred_check
      _
    $region11: #{koopman_operator_forward.1} parent=1 // pred_check_branch
      %35 = sbr.rel (0) target = $region13
    $region12: #{koopman_operator_forward.1} parent=1 // pred_region
      %37 = dma.done [#allocation3], 256
    $region13: #{koopman_operator_forward.1} parent=1 // pred_fallthru
      _
    // Predicated region
    $region14: #{koopman_operator_forward.1} parent=1 // pred_check
      _
    $region15: #{koopman_operator_forward.1} parent=1 // pred_check_branch
      %39 = sbr.rel (0) target = $region17
    $region16: #{koopman_operator_forward.1} parent=1 // pred_region
      %41 = dma.done [#allocation6], 8192
    $region17: #{koopman_operator_forward.1} parent=1 // pred_fallthru
      _
    %v42 = vld [vmem:[#allocation2] sm:$0xff]
    %v43 = vld [vmem:[#allocation2 + $0x8] sm:$0xff]
    %v44 = vld [vmem:[#allocation5] sm:$0xff]
    %v45 = vld [vmem:[#allocation5 + $0x8] sm:$0xff]
    %v46 = vld [vmem:[#allocation5 + $0x10] sm:$0xff]
    %v47 = vld [vmem:[#allocation5 + $0x18] sm:$0xff]
    %v48 = vld [vmem:[#allocation5 + $0x20] sm:$0xff]
    %v49 = vld [vmem:[#allocation5 + $0x28] sm:$0xff]
    %v50 = vld [vmem:[#allocation5 + $0x30] sm:$0xff]
    %v51 = vld [vmem:[#allocation5 + $0x38] sm:$0xff]
    %v52 = vld [vmem:[#allocation5 + $0x40] sm:$0xff]
    %v53 = vld [vmem:[#allocation5 + $0x48] sm:$0xff]
    %v54 = vld [vmem:[#allocation5 + $0x50] sm:$0xff]
    %v55 = vld [vmem:[#allocation5 + $0x58] sm:$0xff]
    %v56 = vld [vmem:[#allocation5 + $0x60] sm:$0xff]
    %v57 = vld [vmem:[#allocation5 + $0x68] sm:$0xff]
    %v58 = vld [vmem:[#allocation5 + $0x70] sm:$0xff]
    %v59 = vld [vmem:[#allocation5 + $0x78] sm:$0xff]
    %v60 = vld [vmem:[#allocation5 + $0x80] sm:$0xff]
    %v61 = vld [vmem:[#allocation5 + $0x88] sm:$0xff]
    %v62 = vld [vmem:[#allocation5 + $0x90] sm:$0xff]
    %v63 = vld [vmem:[#allocation5 + $0x98] sm:$0xff]
    %v64 = vld [vmem:[#allocation5 + $0xa0] sm:$0xff]
    %v65 = vld [vmem:[#allocation5 + $0xa8] sm:$0xff]
    %v66 = vld [vmem:[#allocation5 + $0xb0] sm:$0xff]
    %v67 = vld [vmem:[#allocation5 + $0xb8] sm:$0xff]
    %v68 = vld [vmem:[#allocation5 + $0xc0] sm:$0xff]
    %v69 = vld [vmem:[#allocation5 + $0xc8] sm:$0xff]
    %v70 = vld [vmem:[#allocation5 + $0xd0] sm:$0xff]
    %v71 = vld [vmem:[#allocation5 + $0xd8] sm:$0xff]
    %v72 = vld [vmem:[#allocation5 + $0xe0] sm:$0xff]
    %v73 = vld [vmem:[#allocation5 + $0xe8] sm:$0xff]
    %v74 = vld [vmem:[#allocation5 + $0xf0] sm:$0xff]
    %v75 = vld [vmem:[#allocation5 + $0xf8] sm:$0xff]
    %v76 = vld [vmem:[#allocation5 + $0x100] sm:$0xff]
    %v77 = vld [vmem:[#allocation5 + $0x108] sm:$0xff]
    %v78 = vld [vmem:[#allocation5 + $0x110] sm:$0xff]
    %v79 = vld [vmem:[#allocation5 + $0x118] sm:$0xff]
    %v80 = vld [vmem:[#allocation5 + $0x120] sm:$0xff]
    %v81 = vld [vmem:[#allocation5 + $0x128] sm:$0xff]
    %v82 = vld [vmem:[#allocation5 + $0x130] sm:$0xff]
    %v83 = vld [vmem:[#allocation5 + $0x138] sm:$0xff]
    %v84 = vld [vmem:[#allocation5 + $0x140] sm:$0xff]
    %v85 = vld [vmem:[#allocation5 + $0x148] sm:$0xff]
    %v86 = vld [vmem:[#allocation5 + $0x150] sm:$0xff]
    %v87 = vld [vmem:[#allocation5 + $0x158] sm:$0xff]
    %v88 = vld [vmem:[#allocation5 + $0x160] sm:$0xff]
    %v89 = vld [vmem:[#allocation5 + $0x168] sm:$0xff]
    %v90 = vld [vmem:[#allocation5 + $0x170] sm:$0xff]
    %v91 = vld [vmem:[#allocation5 + $0x178] sm:$0xff]
    %v92 = vld [vmem:[#allocation5 + $0x180] sm:$0xff]
    %v93 = vld [vmem:[#allocation5 + $0x188] sm:$0xff]
    %v94 = vld [vmem:[#allocation5 + $0x190] sm:$0xff]
    %v95 = vld [vmem:[#allocation5 + $0x198] sm:$0xff]
    %v96 = vld [vmem:[#allocation5 + $0x1a0] sm:$0xff]
    %v97 = vld [vmem:[#allocation5 + $0x1a8] sm:$0xff]
    %v98 = vld [vmem:[#allocation5 + $0x1b0] sm:$0xff]
    %v99 = vld [vmem:[#allocation5 + $0x1b8] sm:$0xff]
    %v100 = vld [vmem:[#allocation5 + $0x1c0] sm:$0xff]
    %v101 = vld [vmem:[#allocation5 + $0x1c8] sm:$0xff]
    %v102 = vld [vmem:[#allocation5 + $0x1d0] sm:$0xff]
    %v103 = vld [vmem:[#allocation5 + $0x1d8] sm:$0xff]
    %v104 = vld [vmem:[#allocation5 + $0x1e0] sm:$0xff]
    %v105 = vld [vmem:[#allocation5 + $0x1e8] sm:$0xff]
    %v106 = vld [vmem:[#allocation5 + $0x1f0] sm:$0xff]
    %v107 = vld [vmem:[#allocation5 + $0x1f8] sm:$0xff]
    %108 = vmatpush.xpose.msra.mxu0 %v74
    %109 = vmatpush.xpose.msra.mxu0 %v72
    %110 = vmatpush.xpose.msra.mxu0 %v70
    %111 = vmatpush.xpose.msra.mxu0 %v68
    %112 = vmatpush.xpose.msra.mxu0 %v66
    %113 = vmatpush.xpose.msra.mxu0 %v64
    %114 = vmatpush.xpose.msra.mxu0 %v62
    %115 = vmatpush.xpose.msra.mxu0 %v60
    %116 = vmatpush.xpose.msra.mxu0 %v58
    %117 = vmatpush.xpose.msra.mxu0 %v56
    %118 = vmatpush.xpose.msra.mxu0 %v54
    %119 = vmatpush.xpose.msra.mxu0 %v52
    %120 = vmatpush.xpose.msra.mxu0 %v50
    %121 = vmatpush.xpose.msra.mxu0 %v48
    %122 = vmatpush.xpose.msra.mxu0 %v46
    %123 = vmatpush.xpose.msra.mxu0 %v44
    %124 = vmatmul.f32.gmra.mxu0 %v42
    %v125 = vpop.f32.mrf.mxu0
    %v126 = vadd.f32 0.0, %v125
    %127 = vdwg.mxu0
    %128 = vmatpush.xpose.msra.mxu0 %v75
    %129 = vmatpush.xpose.msra.mxu0 %v73
    %130 = vmatpush.xpose.msra.mxu0 %v71
    %131 = vmatpush.xpose.msra.mxu0 %v69
    %132 = vmatpush.xpose.msra.mxu0 %v67
    %133 = vmatpush.xpose.msra.mxu0 %v65
    %134 = vmatpush.xpose.msra.mxu0 %v63
    %135 = vmatpush.xpose.msra.mxu0 %v61
    %136 = vmatpush.xpose.msra.mxu0 %v59
    %137 = vmatpush.xpose.msra.mxu0 %v57
    %138 = vmatpush.xpose.msra.mxu0 %v55
    %139 = vmatpush.xpose.msra.mxu0 %v53
    %140 = vmatpush.xpose.msra.mxu0 %v51
    %141 = vmatpush.xpose.msra.mxu0 %v49
    %142 = vmatpush.xpose.msra.mxu0 %v47
    %143 = vmatpush.xpose.msra.mxu0 %v45
    %144 = vmatmul.f32.gmra.mxu0 %v43
    %v145 = vpop.f32.mrf.mxu0
    %v146 = vadd.f32 %v126, %v145
    %147 = vdwg.mxu0
    %148 = vmatpush.xpose.msra.mxu0 %v106
    %149 = vmatpush.xpose.msra.mxu0 %v104
    %150 = vmatpush.xpose.msra.mxu0 %v102
    %151 = vmatpush.xpose.msra.mxu0 %v100
    %152 = vmatpush.xpose.msra.mxu0 %v98
    %153 = vmatpush.xpose.msra.mxu0 %v96
    %154 = vmatpush.xpose.msra.mxu0 %v94
    %155 = vmatpush.xpose.msra.mxu0 %v92
    %156 = vmatpush.xpose.msra.mxu0 %v90
    %157 = vmatpush.xpose.msra.mxu0 %v88
    %158 = vmatpush.xpose.msra.mxu0 %v86
    %159 = vmatpush.xpose.msra.mxu0 %v84
    %160 = vmatpush.xpose.msra.mxu0 %v82
    %161 = vmatpush.xpose.msra.mxu0 %v80
    %162 = vmatpush.xpose.msra.mxu0 %v78
    %163 = vmatpush.xpose.msra.mxu0 %v76
    %164 = vmatmul.f32.gmra.mxu0 %v42
    %v165 = vpop.f32.mrf.mxu0
    %v166 = vadd.f32 0.0, %v165
    %167 = vdwg.mxu0
    %168 = vmatpush.xpose.msra.mxu0 %v107
    %169 = vmatpush.xpose.msra.mxu0 %v105
    %170 = vmatpush.xpose.msra.mxu0 %v103
    %171 = vmatpush.xpose.msra.mxu0 %v101
    %172 = vmatpush.xpose.msra.mxu0 %v99
    %173 = vmatpush.xpose.msra.mxu0 %v97
    %174 = vmatpush.xpose.msra.mxu0 %v95
    %175 = vmatpush.xpose.msra.mxu0 %v93
    %176 = vmatpush.xpose.msra.mxu0 %v91
    %177 = vmatpush.xpose.msra.mxu0 %v89
    %178 = vmatpush.xpose.msra.mxu0 %v87
    %179 = vmatpush.xpose.msra.mxu0 %v85
    %180 = vmatpush.xpose.msra.mxu0 %v83
    %181 = vmatpush.xpose.msra.mxu0 %v81
    %182 = vmatpush.xpose.msra.mxu0 %v79
    %183 = vmatpush.xpose.msra.mxu0 %v77
    %184 = vmatmul.f32.gmra.mxu0 %v43
    %v185 = vpop.f32.mrf.mxu0
    %v186 = vadd.f32 %v166, %v185
    %187 = vdwg.mxu0
    %188 = vst [vmem:[#allocation7] sm:$0xff] %v146
    %189 = vst [vmem:[#allocation7 + $0x8] sm:$0xff] %v186
    // Predicated region
    $region18: #{koopman_operator_forward.1} parent=1 // pred_check
      _
    $region19: #{koopman_operator_forward.1} parent=1 // pred_check_branch
      %191 = sbr.rel (0) target = $region21
    $region20: #{koopman_operator_forward.1} parent=1 // pred_region
      %193 = vsyncadd [#allocation4], 0
      %s195 = sshll.u32 [#allocation7], 4
      %s196 = int_to_ptr.vmem [resolvable:$true] %s195
      %s197 = sshll.u32 %s2, 4
      %s198 = int_to_ptr.hbm [resolvable:$true] %s197
      %200 = dma.vmem_to_hbm [thread:$0]  %s196, 256, %s198, [#allocation4]
    $region21: #{koopman_operator_forward.1} parent=1 // pred_fallthru
      _
    // Predicated region
    $region22: #{koopman_operator_forward.1} parent=1 // pred_check
      _
    $region23: #{koopman_operator_forward.1} parent=1 // pred_check_branch
      %202 = sbr.rel (0) target = $region25
    $region24: #{koopman_operator_forward.1} parent=1 // pred_region
      %204 = dma.done [#allocation4], 256
    $region25: #{koopman_operator_forward.1} parent=1 // pred_fallthru
      _
    %205 = vsyncpa [#allocation3], 1
    %206 = vsyncpa [#allocation6], 1
    %207 = vsyncpa [#allocation4], 1

</llo_original>
